<compile_context>
chip_gen: v7x
topology: tpu7x:2x2x1
jax: 0.10.0
libtpu: 0.0.40
codegen_flags: <defaults>
</compile_context>

<pallas_src>
import jax
import jax.numpy as jnp
from jax.experimental import pallas as pl
from jax.experimental.pallas import tpu as pltpu

EPS = 1e-5
SLOPE = 0.01


def _bn_fold(h, gamma, beta):
    """Training-mode BatchNorm1d folded into a single scale/shift pass."""
    inv_b = 1.0 / h.shape[0]
    mean = jnp.sum(h, axis=0, keepdims=True) * inv_b
    msq = jnp.sum(h * h, axis=0, keepdims=True) * inv_b
    var = msq - mean * mean                       # biased variance
    s = gamma * jax.lax.rsqrt(var + EPS)
    t = beta - mean * s
    return h * s + t


def _leaky_relu(h):
    return jnp.where(h >= 0, h, SLOPE * h)


def discriminator_kernel(
    x_ref,
    w1_ref, g1_ref, be1_ref,
    w2_ref, g2_ref, be2_ref,
    w3_ref, b3_ref,
    out_ref,
):
    x = x_ref[...]                                # (B, 512) f32

    # fc1 (bias cancelled by BN) -> folded BN -> leaky_relu
    h1 = jnp.dot(x.astype(jnp.bfloat16), w1_ref[...],
                 preferred_element_type=jnp.float32)
    h1 = _leaky_relu(_bn_fold(h1, g1_ref[...], be1_ref[...]))

    # fc2 (bias cancelled by BN) -> folded BN -> leaky_relu
    h2 = jnp.dot(h1.astype(jnp.bfloat16), w2_ref[...],
                 preferred_element_type=jnp.float32)
    h2 = _leaky_relu(_bn_fold(h2, g2_ref[...], be2_ref[...]))

    # fc3 on a lane-padded (128, 128) weight tile; only lanes 0 and 1 are real.
    logits = jnp.dot(h2.astype(jnp.bfloat16), w3_ref[...],
                     preferred_element_type=jnp.float32) + b3_ref[...]

    # Closed-form 2-class log_softmax: softplus of the logit difference.
    l0 = logits[:, 0:1]
    l1 = logits[:, 1:2]
    d = l1 - l0
    sp = jnp.maximum(d, 0.0) + jnp.log1p(jnp.exp(-jnp.abs(d)))   # logsumexp(0, d)
    out0 = -sp                                    # log p(class 0)
    out1 = d - sp                                 # log p(class 1)

    # Lane-dense (B, 128) output slab: log-probs in lanes 0/1, zeros elsewhere.
    lane = jax.lax.broadcasted_iota(jnp.int32, out_ref.shape, 1)
    slab = jnp.where(lane == 0, out0, jnp.where(lane == 1, out1, 0.0))
    out_ref[...] = slab.astype(out_ref.dtype)


def discriminator_forward(x, params):
    (w1, b1, g1, be1, w2, b2, g2, be2, w3, b3) = params
    del b1, b2    # pre-BN biases are mathematically dead in training-mode BN
    B = x.shape[0]

    # bf16 MXU operands (f32 accumulation inside the kernel) -> halved weight DMA.
    w1b = w1.astype(jnp.bfloat16)
    w2b = w2.astype(jnp.bfloat16)
    # Lane-pad fc3 so the matmul result and the output store are lane-dense.
    w3p = jnp.zeros((128, 128), jnp.bfloat16).at[:, :2].set(w3.astype(jnp.bfloat16))
    b3p = jnp.zeros((1, 128), jnp.float32).at[:, :2].set(b3)

    operands = (x, w1b, g1, be1, w2b, g2, be2, w3p, b3p)
    full = lambda shape: pl.BlockSpec(shape, lambda: (0,) * len(shape))

    out_pad = pl.pallas_call(
        discriminator_kernel,
        out_shape=jax.ShapeDtypeStruct((B, 128), jnp.float32),
        in_specs=[full(op.shape) for op in operands],
        out_specs=full((B, 128)),
        compiler_params=pltpu.CompilerParams(vmem_limit_bytes=16 << 20),
    )(*operands)

    # TODO(synk): for large B, add a batch grid with a two-phase BN reduction
    # (sum/sumsq accumulators + pl.when finalize; 'parallel' batch axis and a
    # cross-core stats combine on v7x). BN batch statistics require the whole
    # batch, so the single-block form is kept for small B here.
    return out_pad[:, :2]


def init_params(key):
    """Deterministic parameter init (shapes from Discriminator.__init__)."""
    ks = jax.random.split(key, 6)

    def linear(kw, kb, fan_in, fan_out):
        bound = 1.0 / jnp.sqrt(fan_in)
        w = jax.random.uniform(kw, (fan_in, fan_out), jnp.float32, -bound, bound)
        b = jax.random.uniform(kb, (1, fan_out), jnp.float32, -bound, bound)
        return w, b

    w1, b1 = linear(ks[0], ks[1], 512, 256)
    w2, b2 = linear(ks[2], ks[3], 256, 128)
    w3, b3 = linear(ks[4], ks[5], 128, 2)

    # BatchNorm1d init: gamma=1, beta=0
    g1, be1 = jnp.ones((1, 256), jnp.float32), jnp.zeros((1, 256), jnp.float32)
    g2, be2 = jnp.ones((1, 128), jnp.float32), jnp.zeros((1, 128), jnp.float32)

    return (w1, b1, g1, be1, w2, b2, g2, be2, w3, b3)


def _bn_ref(h, g, be):
    m = jnp.mean(h, axis=0, keepdims=True)
    v = jnp.mean((h - m) ** 2, axis=0, keepdims=True)
    return (h - m) / jnp.sqrt(v + EPS) * g + be


def _lrelu_ref(h):
    return jnp.where(h >= 0, h, SLOPE * h)


def _reference_forward_f32(x, params):
    """PyTorch-faithful f32 reference (biases included, generic log_softmax)."""
    (w1, b1, g1, be1, w2, b2, g2, be2, w3, b3) = params
    h1 = _lrelu_ref(_bn_ref(x @ w1 + b1, g1, be1))
    h2 = _lrelu_ref(_bn_ref(h1 @ w2 + b2, g2, be2))
    logits = h2 @ w3 + b3
    return jax.nn.log_softmax(logits, axis=1)


def _reference_forward_bf16(x, params):
    """Precision-matched reference (same bf16-MXU / f32-accumulate policy)."""
    (w1, b1, g1, be1, w2, b2, g2, be2, w3, b3) = params

    def mm(a, w):
        return jnp.dot(a.astype(jnp.bfloat16), w.astype(jnp.bfloat16),
                       preferred_element_type=jnp.float32)

    h1 = _lrelu_ref(_bn_ref(mm(x, w1), g1, be1))   # bias dropped (cancelled by BN)
    h2 = _lrelu_ref(_bn_ref(mm(h1, w2), g2, be2))
    logits = mm(h2, w3) + b3
    return jax.nn.log_softmax(logits, axis=1)


if __name__ == "__main__":
    key = jax.random.PRNGKey(0)
    kx, kp = jax.random.split(key)

    B = 8
    x = jax.random.normal(kx, (B, 512), jnp.float32)
    params = init_params(kp)

    out = discriminator_forward(x, params)
    out = jax.block_until_ready(out)
    assert out.shape == (B, 2)

    # Tight check vs a reference with the same bf16-MXU precision policy.
    ref_bf16 = _reference_forward_bf16(x, params)
    assert jnp.allclose(out, ref_bf16, atol=2e-3, rtol=2e-3), \
        "mismatch vs precision-matched reference"

    # Looser sanity check vs the full-f32, PyTorch-faithful reference
    # (difference is only bf16 matmul-operand rounding).
    ref_f32 = _reference_forward_f32(x, params)
    assert jnp.allclose(out, ref_f32, atol=5e-2, rtol=5e-2), \
        "mismatch vs f32 reference"

    print("KERNEL_OK")
</pallas_src>

<mosaic_0001>
module attributes {stable_mosaic.version = 11 : i64} {
  func.func @discriminator_kernel(%arg0: memref<8x512xf32, #tpu.memory_space<vmem>>, %arg1: memref<512x256xbf16, #tpu.memory_space<vmem>>, %arg2: memref<1x256xf32, #tpu.memory_space<vmem>>, %arg3: memref<1x256xf32, #tpu.memory_space<vmem>>, %arg4: memref<256x128xbf16, #tpu.memory_space<vmem>>, %arg5: memref<1x128xf32, #tpu.memory_space<vmem>>, %arg6: memref<1x128xf32, #tpu.memory_space<vmem>>, %arg7: memref<128x128xbf16, #tpu.memory_space<vmem>>, %arg8: memref<1x128xf32, #tpu.memory_space<vmem>>, %arg9: memref<8x128xf32, #tpu.memory_space<vmem>>) attributes {dimension_semantics = [], scalar_prefetch = 0 : i64, scratch_operands = 0 : i64, tpu.core_type = #tpu.core_type<tc>} {
    %c0 = arith.constant 0 : index
    %c0_0 = arith.constant 0 : index
    %0 = vector.load %arg0[%c0, %c0_0] : memref<8x512xf32, #tpu.memory_space<vmem>>, vector<8x512xf32>
    %1 = arith.truncf %0 : vector<8x512xf32> to vector<8x512xbf16>
    %c0_1 = arith.constant 0 : index
    %c0_2 = arith.constant 0 : index
    %2 = vector.load %arg1[%c0_1, %c0_2] : memref<512x256xbf16, #tpu.memory_space<vmem>>, vector<512x256xbf16>
    %cst = arith.constant dense<0.000000e+00> : vector<8x256xf32>
    %3 = tpu.matmul %1, %2, %cst {dimension_numbers = #tpu.dot_dimension_numbers<[1], [0], [0], [1], [0, 0, 1, 1], [], []>} : vector<8x512xbf16>, vector<512x256xbf16>, vector<8x256xf32> -> vector<8x256xf32>
    %c0_3 = arith.constant 0 : index
    %c0_4 = arith.constant 0 : index
    %4 = vector.load %arg2[%c0_3, %c0_4] : memref<1x256xf32, #tpu.memory_space<vmem>>, vector<1x256xf32>
    %c0_5 = arith.constant 0 : index
    %c0_6 = arith.constant 0 : index
    %5 = vector.load %arg3[%c0_5, %c0_6] : memref<1x256xf32, #tpu.memory_space<vmem>>, vector<1x256xf32>
    %cst_7 = arith.constant dense<0.000000e+00> : vector<256xf32>
    %6 = vector.multi_reduction <add>, %3, %cst_7 [0] : vector<8x256xf32> to vector<256xf32>
    %7 = vector.shape_cast %6 : vector<256xf32> to vector<1x256xf32>
    %cst_8 = arith.constant 1.250000e-01 : f32
    %8 = vector.broadcast %cst_8 : f32 to vector<1x256xf32>
    %9 = arith.mulf %7, %8 : vector<1x256xf32>
    %10 = arith.mulf %3, %3 : vector<8x256xf32>
    %cst_9 = arith.constant dense<0.000000e+00> : vector<256xf32>
    %11 = vector.multi_reduction <add>, %10, %cst_9 [0] : vector<8x256xf32> to vector<256xf32>
    %12 = vector.shape_cast %11 : vector<256xf32> to vector<1x256xf32>
    %cst_10 = arith.constant 1.250000e-01 : f32
    %13 = vector.broadcast %cst_10 : f32 to vector<1x256xf32>
    %14 = arith.mulf %12, %13 : vector<1x256xf32>
    %15 = arith.mulf %9, %9 : vector<1x256xf32>
    %16 = arith.subf %14, %15 : vector<1x256xf32>
    %cst_11 = arith.constant 9.99999974E-6 : f32
    %17 = vector.broadcast %cst_11 : f32 to vector<1x256xf32>
    %18 = arith.addf %16, %17 : vector<1x256xf32>
    %19 = math.rsqrt %18 : vector<1x256xf32>
    %20 = arith.mulf %4, %19 : vector<1x256xf32>
    %21 = arith.mulf %9, %20 : vector<1x256xf32>
    %22 = arith.subf %5, %21 : vector<1x256xf32>
    %23 = vector.broadcast %20 : vector<1x256xf32> to vector<8x256xf32>
    %24 = arith.mulf %3, %23 : vector<8x256xf32>
    %25 = vector.broadcast %22 : vector<1x256xf32> to vector<8x256xf32>
    %26 = arith.addf %24, %25 : vector<8x256xf32>
    %cst_12 = arith.constant 0.000000e+00 : f32
    %27 = vector.broadcast %cst_12 : f32 to vector<8x256xf32>
    %28 = arith.cmpf oge, %26, %27 : vector<8x256xf32>
    %cst_13 = arith.constant 0.00999999977 : f32
    %29 = vector.broadcast %cst_13 : f32 to vector<8x256xf32>
    %30 = arith.mulf %29, %26 : vector<8x256xf32>
    %31 = arith.select %28, %26, %30 : vector<8x256xi1>, vector<8x256xf32>
    %32 = arith.truncf %31 : vector<8x256xf32> to vector<8x256xbf16>
    %c0_14 = arith.constant 0 : index
    %c0_15 = arith.constant 0 : index
    %33 = vector.load %arg4[%c0_14, %c0_15] : memref<256x128xbf16, #tpu.memory_space<vmem>>, vector<256x128xbf16>
    %cst_16 = arith.constant dense<0.000000e+00> : vector<8x128xf32>
    %34 = tpu.matmul %32, %33, %cst_16 {dimension_numbers = #tpu.dot_dimension_numbers<[1], [0], [0], [1], [0, 0, 1, 1], [], []>} : vector<8x256xbf16>, vector<256x128xbf16>, vector<8x128xf32> -> vector<8x128xf32>
    %c0_17 = arith.constant 0 : index
    %c0_18 = arith.constant 0 : index
    %35 = vector.load %arg5[%c0_17, %c0_18] : memref<1x128xf32, #tpu.memory_space<vmem>>, vector<1x128xf32>
    %c0_19 = arith.constant 0 : index
    %c0_20 = arith.constant 0 : index
    %36 = vector.load %arg6[%c0_19, %c0_20] : memref<1x128xf32, #tpu.memory_space<vmem>>, vector<1x128xf32>
    %cst_21 = arith.constant dense<0.000000e+00> : vector<128xf32>
    %37 = vector.multi_reduction <add>, %34, %cst_21 [0] : vector<8x128xf32> to vector<128xf32>
    %38 = vector.shape_cast %37 : vector<128xf32> to vector<1x128xf32>
    %cst_22 = arith.constant 1.250000e-01 : f32
    %39 = vector.broadcast %cst_22 : f32 to vector<1x128xf32>
    %40 = arith.mulf %38, %39 : vector<1x128xf32>
    %41 = arith.mulf %34, %34 : vector<8x128xf32>
    %cst_23 = arith.constant dense<0.000000e+00> : vector<128xf32>
    %42 = vector.multi_reduction <add>, %41, %cst_23 [0] : vector<8x128xf32> to vector<128xf32>
    %43 = vector.shape_cast %42 : vector<128xf32> to vector<1x128xf32>
    %cst_24 = arith.constant 1.250000e-01 : f32
    %44 = vector.broadcast %cst_24 : f32 to vector<1x128xf32>
    %45 = arith.mulf %43, %44 : vector<1x128xf32>
    %46 = arith.mulf %40, %40 : vector<1x128xf32>
    %47 = arith.subf %45, %46 : vector<1x128xf32>
    %cst_25 = arith.constant 9.99999974E-6 : f32
    %48 = vector.broadcast %cst_25 : f32 to vector<1x128xf32>
    %49 = arith.addf %47, %48 : vector<1x128xf32>
    %50 = math.rsqrt %49 : vector<1x128xf32>
    %51 = arith.mulf %35, %50 : vector<1x128xf32>
    %52 = arith.mulf %40, %51 : vector<1x128xf32>
    %53 = arith.subf %36, %52 : vector<1x128xf32>
    %54 = vector.broadcast %51 : vector<1x128xf32> to vector<8x128xf32>
    %55 = arith.mulf %34, %54 : vector<8x128xf32>
    %56 = vector.broadcast %53 : vector<1x128xf32> to vector<8x128xf32>
    %57 = arith.addf %55, %56 : vector<8x128xf32>
    %cst_26 = arith.constant 0.000000e+00 : f32
    %58 = vector.broadcast %cst_26 : f32 to vector<8x128xf32>
    %59 = arith.cmpf oge, %57, %58 : vector<8x128xf32>
    %cst_27 = arith.constant 0.00999999977 : f32
    %60 = vector.broadcast %cst_27 : f32 to vector<8x128xf32>
    %61 = arith.mulf %60, %57 : vector<8x128xf32>
    %62 = arith.select %59, %57, %61 : vector<8x128xi1>, vector<8x128xf32>
    %63 = arith.truncf %62 : vector<8x128xf32> to vector<8x128xbf16>
    %c0_28 = arith.constant 0 : index
    %c0_29 = arith.constant 0 : index
    %64 = vector.load %arg7[%c0_28, %c0_29] : memref<128x128xbf16, #tpu.memory_space<vmem>>, vector<128x128xbf16>
    %cst_30 = arith.constant dense<0.000000e+00> : vector<8x128xf32>
    %65 = tpu.matmul %63, %64, %cst_30 {dimension_numbers = #tpu.dot_dimension_numbers<[1], [0], [0], [1], [0, 0, 1, 1], [], []>} : vector<8x128xbf16>, vector<128x128xbf16>, vector<8x128xf32> -> vector<8x128xf32>
    %c0_31 = arith.constant 0 : index
    %c0_32 = arith.constant 0 : index
    %66 = vector.load %arg8[%c0_31, %c0_32] : memref<1x128xf32, #tpu.memory_space<vmem>>, vector<1x128xf32>
    %67 = vector.broadcast %66 : vector<1x128xf32> to vector<8x128xf32>
    %68 = arith.addf %65, %67 : vector<8x128xf32>
    %69 = vector.extract_strided_slice %68 {offsets = [0, 0], sizes = [8, 1], strides = [1, 1]} : vector<8x128xf32> to vector<8x1xf32>
    %70 = vector.extract_strided_slice %68 {offsets = [0, 1], sizes = [8, 1], strides = [1, 1]} : vector<8x128xf32> to vector<8x1xf32>
    %71 = arith.subf %70, %69 : vector<8x1xf32>
    %cst_33 = arith.constant 0.000000e+00 : f32
    %72 = vector.broadcast %cst_33 : f32 to vector<8x1xf32>
    %73 = arith.maximumf %71, %72 : vector<8x1xf32>
    %74 = math.absf %71 : vector<8x1xf32>
    %cst_34 = arith.constant 0.000000e+00 : f32
    %75 = vector.broadcast %cst_34 : f32 to vector<8x1xf32>
    %76 = arith.subf %75, %74 : vector<8x1xf32>
    %77 = math.exp %76 : vector<8x1xf32>
    %78 = math.log1p %77 : vector<8x1xf32>
    %79 = arith.addf %73, %78 : vector<8x1xf32>
    %cst_35 = arith.constant 0.000000e+00 : f32
    %80 = vector.broadcast %cst_35 : f32 to vector<8x1xf32>
    %81 = arith.subf %80, %79 : vector<8x1xf32>
    %82 = arith.subf %71, %79 : vector<8x1xf32>
    %83 = tpu.iota {dimensions = array<i32: 1>} : vector<8x128xi32>
    %c0_i32 = arith.constant 0 : i32
    %84 = vector.broadcast %c0_i32 : i32 to vector<8x128xi32>
    %85 = arith.cmpi eq, %83, %84 : vector<8x128xi32>
    %c1_i32 = arith.constant 1 : i32
    %86 = vector.broadcast %c1_i32 : i32 to vector<8x128xi32>
    %87 = arith.cmpi eq, %83, %86 : vector<8x128xi32>
    %cst_36 = arith.constant 0.000000e+00 : f32
    %88 = vector.shape_cast %82 : vector<8x1xf32> to vector<8x1xf32>
    %89 = vector.broadcast %88 : vector<8x1xf32> to vector<8x128xf32>
    %90 = vector.broadcast %cst_36 : f32 to vector<8x128xf32>
    %91 = arith.select %87, %89, %90 : vector<8x128xi1>, vector<8x128xf32>
    %92 = vector.shape_cast %81 : vector<8x1xf32> to vector<8x1xf32>
    %93 = vector.broadcast %92 : vector<8x1xf32> to vector<8x128xf32>
    %94 = arith.select %85, %93, %91 : vector<8x128xi1>, vector<8x128xf32>
    %c0_37 = arith.constant 0 : index
    %c0_38 = arith.constant 0 : index
    %95 = vector.load %arg9[%c0_37, %c0_38] : memref<8x128xf32, #tpu.memory_space<vmem>>, vector<8x128xf32>
    tpu.vector_store %arg9[%c0_37, %c0_38], %94 {strides = array<i32>} : memref<8x128xf32, #tpu.memory_space<vmem>>, vector<8x128xf32>,
    return
  }
}

</mosaic_0001>

<llo_original>
// kernel: tpu_custom_call.1
$region0: #{tpu_custom_call.1}
  #allocation0 [shape = 'u32[]', space=smem, size = 0x4, offset = 0x4, fixed_abs, tag = 'smem constant byte address 0x4 - core index']
  #allocation1 [shape = 'u32[144,128]{1,0:T(1,128)}', space=vmem, size = 0x12000, scoped, tag = 'internal scratch']
  %s0 = inlined_call_operand.hbm [shape: f32[8,512], index: 0, kind: input, shape index: {}]
  %s1 = inlined_call_operand.hbm [shape: bf16[512,256], index: 1, kind: input, shape index: {}]
  %s2 = inlined_call_operand.vmem [shape: f32[1,256], index: 2, kind: input, shape index: {}]
  %s3 = inlined_call_operand.vmem [shape: f32[1,256], index: 3, kind: input, shape index: {}]
  %s4 = inlined_call_operand.hbm [shape: bf16[256,128], index: 4, kind: input, shape index: {}]
  %s5 = inlined_call_operand.vmem [shape: f32[1,128], index: 5, kind: input, shape index: {}]
  %s6 = inlined_call_operand.vmem [shape: f32[1,128], index: 6, kind: input, shape index: {}]
  %s7 = inlined_call_operand.hbm [shape: bf16[128,128], index: 7, kind: input, shape index: {}]
  %s8 = inlined_call_operand.vmem [shape: f32[1,128], index: 8, kind: input, shape index: {}]
  %s9 = inlined_call_operand.hbm [shape: f32[8,128], index: 9, kind: output, shape index: {}]
  %s10 = sld [smem:[#allocation0]]
  $region62: #{tpu_custom_call.1} parent=0
    _
  %s12 = ssub.s32 1, %s10
  %s13 = scalar_select 0, %s12, %s10
  $region1: #{tpu_custom_call.1} parent=0
    #allocation2 [shape = 'u8[16384]{0}', space=vmem, size = 0x4000, scoped, tag = 'input window, operand 0, single buffered']
    #allocation3 [shape = 's32[1]{0}', space=sflag, size = 0x4, scoped, tag = 'scoped memory for tpu_custom_call.1']
    #allocation4 [shape = 's32[1]{0}', space=sflag, size = 0x4, scoped, tag = 'scoped memory for tpu_custom_call.1']
    #allocation5 [shape = 'u8[262144]{0}', space=vmem, size = 0x40000, scoped, tag = 'input window, operand 1, single buffered']
    #allocation6 [shape = 's32[1]{0}', space=sflag, size = 0x4, scoped, tag = 'scoped memory for tpu_custom_call.1']
    #allocation7 [shape = 'u8[65536]{0}', space=vmem, size = 0x10000, scoped, tag = 'input window, operand 4, single buffered']
    #allocation8 [shape = 'u8[32768]{0}', space=vmem, size = 0x8000, scoped, tag = 'input window, operand 7, single buffered']
    #allocation9 [shape = 's32[1]{0}', space=sflag, size = 0x4, scoped, tag = 'scoped memory for tpu_custom_call.1']
    #allocation10 [shape = 'u8[4096]{0}', space=vmem, size = 0x1000, scoped, tag = 'output window, operand 0, single buffered']
    %14 = vsyncpa [#allocation3], 0
    %15 = vsyncpa [#allocation6], 0
    %16 = vsyncpa [#allocation9], 0
    %17 = vsyncpa [#allocation4], 0
    // Predicated region
    $region2: #{tpu_custom_call.1} parent=1 // pred_check
      _
    $region3: #{tpu_custom_call.1} parent=1 // pred_check_branch
      %19 = sbr.rel (0) target = $region5
    $region4: #{tpu_custom_call.1} parent=1 // pred_region
      %s21 = ssub.s32 512, 512
      %22 = vsyncadd [#allocation3], %s21
      %s24 = sshll.u32 [#allocation2], 4
      %s25 = int_to_ptr.vmem [resolvable:$true] %s24
      %27 = dma.hbm_to_vmem [thread:$0]  %s0, 512, %s25, [#allocation3]
    $region5: #{tpu_custom_call.1} parent=1 // pred_fallthru
      _
    // Predicated region
    $region6: #{tpu_custom_call.1} parent=1 // pred_check
      _
    $region7: #{tpu_custom_call.1} parent=1 // pred_check_branch
      %29 = sbr.rel (0) target = $region9
    $region8: #{tpu_custom_call.1} parent=1 // pred_region
      %s31 = ssub.s32 8192, 8192
      %32 = vsyncadd [#allocation6], %s31
      %s33 = sshll.u32 [#allocation5], 4
      %s34 = int_to_ptr.vmem [resolvable:$true] %s33
      %39 = dma.hbm_to_vmem [thread:$0]  %s1, 8192, %s34, [#allocation6], 128, 128, 8
    $region9: #{tpu_custom_call.1} parent=1 // pred_fallthru
      _
    // Predicated region
    $region10: #{tpu_custom_call.1} parent=1 // pred_check
      _
    $region11: #{tpu_custom_call.1} parent=1 // pred_check_branch
      %41 = sbr.rel (0) target = $region13
    $region12: #{tpu_custom_call.1} parent=1 // pred_region
      _
    $region13: #{tpu_custom_call.1} parent=1 // pred_fallthru
      _
    // Predicated region
    $region14: #{tpu_custom_call.1} parent=1 // pred_check
      _
    $region15: #{tpu_custom_call.1} parent=1 // pred_check_branch
      %43 = sbr.rel (0) target = $region17
    $region16: #{tpu_custom_call.1} parent=1 // pred_region
      _
    $region17: #{tpu_custom_call.1} parent=1 // pred_fallthru
      _
    // Predicated region
    $region18: #{tpu_custom_call.1} parent=1 // pred_check
      _
    $region19: #{tpu_custom_call.1} parent=1 // pred_check_branch
      %45 = sbr.rel (0) target = $region21
    $region20: #{tpu_custom_call.1} parent=1 // pred_region
      %s47 = ssub.s32 2048, 2048
      %48 = vsyncadd [#allocation6], %s47
      %s49 = sshll.u32 [#allocation7], 4
      %s50 = int_to_ptr.vmem [resolvable:$true] %s49
      %55 = dma.hbm_to_vmem [thread:$0]  %s4, 2048, %s50, [#allocation6], 64, 64, 4
    $region21: #{tpu_custom_call.1} parent=1 // pred_fallthru
      _
    // Predicated region
    $region22: #{tpu_custom_call.1} parent=1 // pred_check
      _
    $region23: #{tpu_custom_call.1} parent=1 // pred_check_branch
      %57 = sbr.rel (0) target = $region25
    $region24: #{tpu_custom_call.1} parent=1 // pred_region
      _
    $region25: #{tpu_custom_call.1} parent=1 // pred_fallthru
      _
    // Predicated region
    $region26: #{tpu_custom_call.1} parent=1 // pred_check
      _
    $region27: #{tpu_custom_call.1} parent=1 // pred_check_branch
      %59 = sbr.rel (0) target = $region29
    $region28: #{tpu_custom_call.1} parent=1 // pred_region
      _
    $region29: #{tpu_custom_call.1} parent=1 // pred_fallthru
      _
    // Predicated region
    $region30: #{tpu_custom_call.1} parent=1 // pred_check
      _
    $region31: #{tpu_custom_call.1} parent=1 // pred_check_branch
      %61 = sbr.rel (0) target = $region33
    $region32: #{tpu_custom_call.1} parent=1 // pred_region
      %s63 = ssub.s32 1024, 1024
      %64 = vsyncadd [#allocation9], %s63
      %s65 = sshll.u32 [#allocation8], 4
      %s66 = int_to_ptr.vmem [resolvable:$true] %s65
      %71 = dma.hbm_to_vmem [thread:$0]  %s7, 1024, %s66, [#allocation9], 64, 64, 4
    $region33: #{tpu_custom_call.1} parent=1 // pred_fallthru
      _
    // Predicated region
    $region34: #{tpu_custom_call.1} parent=1 // pred_check
      _
    $region35: #{tpu_custom_call.1} parent=1 // pred_check_branch
      %73 = sbr.rel (0) target = $region37
    $region36: #{tpu_custom_call.1} parent=1 // pred_region
      _
    $region37: #{tpu_custom_call.1} parent=1 // pred_fallthru
      _
    // Predicated region
    $region38: #{tpu_custom_call.1} parent=1 // pred_check
      _
    $region39: #{tpu_custom_call.1} parent=1 // pred_check_branch
      %75 = sbr.rel (0) target = $region41
    $region40: #{tpu_custom_call.1} parent=1 // pred_region
      %76 = dma.done [#allocation3], 512
    $region41: #{tpu_custom_call.1} parent=1 // pred_fallthru
      _
    // Predicated region
    $region42: #{tpu_custom_call.1} parent=1 // pred_check
      _
    $region43: #{tpu_custom_call.1} parent=1 // pred_check_branch
      %78 = sbr.rel (0) target = $region45
    $region44: #{tpu_custom_call.1} parent=1 // pred_region
      %79 = dma.done [#allocation6], 8192
    $region45: #{tpu_custom_call.1} parent=1 // pred_fallthru
      _
    // Predicated region
    $region46: #{tpu_custom_call.1} parent=1 // pred_check
      _
    $region47: #{tpu_custom_call.1} parent=1 // pred_check_branch
      %81 = sbr.rel (0) target = $region49
    $region48: #{tpu_custom_call.1} parent=1 // pred_region
      %82 = dma.done [#allocation6], 2048
    $region49: #{tpu_custom_call.1} parent=1 // pred_fallthru
      _
    // Predicated region
    $region50: #{tpu_custom_call.1} parent=1 // pred_check
      _
    $region51: #{tpu_custom_call.1} parent=1 // pred_check_branch
      %84 = sbr.rel (0) target = $region53
    $region52: #{tpu_custom_call.1} parent=1 // pred_region
      %85 = dma.done [#allocation9], 1024
    $region53: #{tpu_custom_call.1} parent=1 // pred_fallthru
      _
    %v87 = vld [vmem:[#allocation2] sm:$0xff]
    %v88 = vld [vmem:[#allocation2 + $0x8] sm:$0xff]
    %v89 = vld [vmem:[#allocation2 + $0x10] sm:$0xff]
    %v90 = vld [vmem:[#allocation2 + $0x18] sm:$0xff]
    %v91 = vpack.c.bf16 %v87, %v87
    %v92 = vpack.c.bf16 %v88, %v88
    %v93 = vpack.c.bf16 %v89, %v89
    %v94 = vpack.c.bf16 %v90, %v90
    %v95 = vld [vmem:[#allocation5] sm:$0xff]
    %v96 = vld [vmem:[#allocation5 + $0x8] sm:$0xff]
    %v97 = vld [vmem:[#allocation5 + $0x10] sm:$0xff]
    %v98 = vld [vmem:[#allocation5 + $0x18] sm:$0xff]
    %v99 = vld [vmem:[#allocation5 + $0x20] sm:$0xff]
    %v100 = vld [vmem:[#allocation5 + $0x28] sm:$0xff]
    %v101 = vld [vmem:[#allocation5 + $0x30] sm:$0xff]
    %v102 = vld [vmem:[#allocation5 + $0x38] sm:$0xff]
    %v103 = vld [vmem:[#allocation5 + $0x40] sm:$0xff]
    %v104 = vld [vmem:[#allocation5 + $0x48] sm:$0xff]
    %v105 = vld [vmem:[#allocation5 + $0x50] sm:$0xff]
    %v106 = vld [vmem:[#allocation5 + $0x58] sm:$0xff]
    %v107 = vld [vmem:[#allocation5 + $0x60] sm:$0xff]
    %v108 = vld [vmem:[#allocation5 + $0x68] sm:$0xff]
    %v109 = vld [vmem:[#allocation5 + $0x70] sm:$0xff]
    %v110 = vld [vmem:[#allocation5 + $0x78] sm:$0xff]
    %v111 = vld [vmem:[#allocation5 + $0x80] sm:$0xff]
    %v112 = vld [vmem:[#allocation5 + $0x88] sm:$0xff]
    %v113 = vld [vmem:[#allocation5 + $0x90] sm:$0xff]
    %v114 = vld [vmem:[#allocation5 + $0x98] sm:$0xff]
    %v115 = vld [vmem:[#allocation5 + $0xa0] sm:$0xff]
    %v116 = vld [vmem:[#allocation5 + $0xa8] sm:$0xff]
    %v117 = vld [vmem:[#allocation5 + $0xb0] sm:$0xff]
    %v118 = vld [vmem:[#allocation5 + $0xb8] sm:$0xff]
    %v119 = vld [vmem:[#allocation5 + $0xc0] sm:$0xff]
    %v120 = vld [vmem:[#allocation5 + $0xc8] sm:$0xff]
    %v121 = vld [vmem:[#allocation5 + $0xd0] sm:$0xff]
    %v122 = vld [vmem:[#allocation5 + $0xd8] sm:$0xff]
    %v123 = vld [vmem:[#allocation5 + $0xe0] sm:$0xff]
    %v124 = vld [vmem:[#allocation5 + $0xe8] sm:$0xff]
    %v125 = vld [vmem:[#allocation5 + $0xf0] sm:$0xff]
    %v126 = vld [vmem:[#allocation5 + $0xf8] sm:$0xff]
    %v127 = vld [vmem:[#allocation5 + $0x100] sm:$0xff]
    %v128 = vld [vmem:[#allocation5 + $0x108] sm:$0xff]
    %v129 = vld [vmem:[#allocation5 + $0x110] sm:$0xff]
    %v130 = vld [vmem:[#allocation5 + $0x118] sm:$0xff]
    %v131 = vld [vmem:[#allocation5 + $0x120] sm:$0xff]
    %v132 = vld [vmem:[#allocation5 + $0x128] sm:$0xff]
    %v133 = vld [vmem:[#allocation5 + $0x130] sm:$0xff]
    %v134 = vld [vmem:[#allocation5 + $0x138] sm:$0xff]
    %v135 = vld [vmem:[#allocation5 + $0x140] sm:$0xff]
    %v136 = vld [vmem:[#allocation5 + $0x148] sm:$0xff]
    %v137 = vld [vmem:[#allocation5 + $0x150] sm:$0xff]
    %v138 = vld [vmem:[#allocation5 + $0x158] sm:$0xff]
    %v139 = vld [vmem:[#allocation5 + $0x160] sm:$0xff]
    %v140 = vld [vmem:[#allocation5 + $0x168] sm:$0xff]
    %v141 = vld [vmem:[#allocation5 + $0x170] sm:$0xff]
    %v142 = vld [vmem:[#allocation5 + $0x178] sm:$0xff]
    %v143 = vld [vmem:[#allocation5 + $0x180] sm:$0xff]
    %v144 = vld [vmem:[#allocation5 + $0x188] sm:$0xff]
    %v145 = vld [vmem:[#allocation5 + $0x190] sm:$0xff]
    %v146 = vld [vmem:[#allocation5 + $0x198] sm:$0xff]
    %v147 = vld [vmem:[#allocation5 + $0x1a0] sm:$0xff]
    %v148 = vld [vmem:[#allocation5 + $0x1a8] sm:$0xff]
    %v149 = vld [vmem:[#allocation5 + $0x1b0] sm:$0xff]
    %v150 = vld [vmem:[#allocation5 + $0x1b8] sm:$0xff]
    %v151 = vld [vmem:[#allocation5 + $0x1c0] sm:$0xff]
    %v152 = vld [vmem:[#allocation5 + $0x1c8] sm:$0xff]
    %v153 = vld [vmem:[#allocation5 + $0x1d0] sm:$0xff]
    %v154 = vld [vmem:[#allocation5 + $0x1d8] sm:$0xff]
    %v155 = vld [vmem:[#allocation5 + $0x1e0] sm:$0xff]
    %v156 = vld [vmem:[#allocation5 + $0x1e8] sm:$0xff]
    %v157 = vld [vmem:[#allocation5 + $0x1f0] sm:$0xff]
    %v158 = vld [vmem:[#allocation5 + $0x1f8] sm:$0xff]
    %v223 = vunpack.c.l.b16 %v95
    %v224 = vunpack.c.h.b16 %v95
    %v225 = vunpack.c.l.b16 %v96
    %v226 = vunpack.c.h.b16 %v96
    %v227 = vunpack.c.l.b16 %v97
    %v228 = vunpack.c.h.b16 %v97
    %v229 = vunpack.c.l.b16 %v98
    %v230 = vunpack.c.h.b16 %v98
    %v231 = vunpack.c.l.b16 %v99
    %v232 = vunpack.c.h.b16 %v99
    %v233 = vunpack.c.l.b16 %v100
    %v234 = vunpack.c.h.b16 %v100
    %v235 = vunpack.c.l.b16 %v101
    %v236 = vunpack.c.h.b16 %v101
    %v237 = vunpack.c.l.b16 %v102
    %v238 = vunpack.c.h.b16 %v102
    %v239 = vunpack.c.l.b16 %v103
    %v240 = vunpack.c.h.b16 %v103
    %v241 = vunpack.c.l.b16 %v104
    %v242 = vunpack.c.h.b16 %v104
    %v243 = vunpack.c.l.b16 %v105
    %v244 = vunpack.c.h.b16 %v105
    %v245 = vunpack.c.l.b16 %v106
    %v246 = vunpack.c.h.b16 %v106
    %v247 = vunpack.c.l.b16 %v107
    %v248 = vunpack.c.h.b16 %v107
    %v249 = vunpack.c.l.b16 %v108
    %v250 = vunpack.c.h.b16 %v108
    %v251 = vunpack.c.l.b16 %v109
    %v252 = vunpack.c.h.b16 %v109
    %v253 = vunpack.c.l.b16 %v110
    %v254 = vunpack.c.h.b16 %v110
    %v255 = vunpack.c.l.b16 %v111
    %v256 = vunpack.c.h.b16 %v111
    %v257 = vunpack.c.l.b16 %v112
    %v258 = vunpack.c.h.b16 %v112
    %v259 = vunpack.c.l.b16 %v113
    %v260 = vunpack.c.h.b16 %v113
    %v261 = vunpack.c.l.b16 %v114
    %v262 = vunpack.c.h.b16 %v114
    %v263 = vunpack.c.l.b16 %v115
    %v264 = vunpack.c.h.b16 %v115
    %v265 = vunpack.c.l.b16 %v116
    %v266 = vunpack.c.h.b16 %v116
    %v267 = vunpack.c.l.b16 %v117
    %v268 = vunpack.c.h.b16 %v117
    %v269 = vunpack.c.l.b16 %v118
    %v270 = vunpack.c.h.b16 %v118
    %v271 = vunpack.c.l.b16 %v119
    %v272 = vunpack.c.h.b16 %v119
    %v273 = vunpack.c.l.b16 %v120
    %v274 = vunpack.c.h.b16 %v120
    %v275 = vunpack.c.l.b16 %v121
    %v276 = vunpack.c.h.b16 %v121
    %v277 = vunpack.c.l.b16 %v122
    %v278 = vunpack.c.h.b16 %v122
    %v279 = vunpack.c.l.b16 %v123
    %v280 = vunpack.c.h.b16 %v123
    %v281 = vunpack.c.l.b16 %v124
    %v282 = vunpack.c.h.b16 %v124
    %v283 = vunpack.c.l.b16 %v125
    %v284 = vunpack.c.h.b16 %v125
    %v285 = vunpack.c.l.b16 %v126
    %v286 = vunpack.c.h.b16 %v126
    %v287 = vunpack.c.l.b16 %v127
    %v288 = vunpack.c.h.b16 %v127
    %v289 = vunpack.c.l.b16 %v128
    %v290 = vunpack.c.h.b16 %v128
    %v291 = vunpack.c.l.b16 %v129
    %v292 = vunpack.c.h.b16 %v129
    %v293 = vunpack.c.l.b16 %v130
    %v294 = vunpack.c.h.b16 %v130
    %v295 = vunpack.c.l.b16 %v131
    %v296 = vunpack.c.h.b16 %v131
    %v297 = vunpack.c.l.b16 %v132
    %v298 = vunpack.c.h.b16 %v132
    %v299 = vunpack.c.l.b16 %v133
    %v300 = vunpack.c.h.b16 %v133
    %v301 = vunpack.c.l.b16 %v134
    %v302 = vunpack.c.h.b16 %v134
    %v303 = vunpack.c.l.b16 %v135
    %v304 = vunpack.c.h.b16 %v135
    %v305 = vunpack.c.l.b16 %v136
    %v306 = vunpack.c.h.b16 %v136
    %v307 = vunpack.c.l.b16 %v137
    %v308 = vunpack.c.h.b16 %v137
    %v309 = vunpack.c.l.b16 %v138
    %v310 = vunpack.c.h.b16 %v138
    %v311 = vunpack.c.l.b16 %v139
    %v312 = vunpack.c.h.b16 %v139
    %v313 = vunpack.c.l.b16 %v140
    %v314 = vunpack.c.h.b16 %v140
    %v315 = vunpack.c.l.b16 %v141
    %v316 = vunpack.c.h.b16 %v141
    %v317 = vunpack.c.l.b16 %v142
    %v318 = vunpack.c.h.b16 %v142
    %v319 = vunpack.c.l.b16 %v143
    %v320 = vunpack.c.h.b16 %v143
    %v321 = vunpack.c.l.b16 %v144
    %v322 = vunpack.c.h.b16 %v144
    %v323 = vunpack.c.l.b16 %v145
    %v324 = vunpack.c.h.b16 %v145
    %v325 = vunpack.c.l.b16 %v146
    %v326 = vunpack.c.h.b16 %v146
    %v327 = vunpack.c.l.b16 %v147
    %v328 = vunpack.c.h.b16 %v147
    %v329 = vunpack.c.l.b16 %v148
    %v330 = vunpack.c.h.b16 %v148
    %v331 = vunpack.c.l.b16 %v149
    %v332 = vunpack.c.h.b16 %v149
    %v333 = vunpack.c.l.b16 %v150
    %v334 = vunpack.c.h.b16 %v150
    %v335 = vunpack.c.l.b16 %v151
    %v336 = vunpack.c.h.b16 %v151
    %v337 = vunpack.c.l.b16 %v152
    %v338 = vunpack.c.h.b16 %v152
    %v339 = vunpack.c.l.b16 %v153
    %v340 = vunpack.c.h.b16 %v153
    %v341 = vunpack.c.l.b16 %v154
    %v342 = vunpack.c.h.b16 %v154
    %v343 = vunpack.c.l.b16 %v155
    %v344 = vunpack.c.h.b16 %v155
    %v345 = vunpack.c.l.b16 %v156
    %v346 = vunpack.c.h.b16 %v156
    %v347 = vunpack.c.l.b16 %v157
    %v348 = vunpack.c.h.b16 %v157
    %v349 = vunpack.c.l.b16 %v158
    %v350 = vunpack.c.h.b16 %v158
    %v351 = vpack.c.b16 %v225, %v223
    %v352 = vpack.c.b16 %v226, %v224
    %v353 = vpack.c.b16 %v229, %v227
    %v354 = vpack.c.b16 %v230, %v228
    %v355 = vpack.c.b16 %v233, %v231
    %v356 = vpack.c.b16 %v234, %v232
    %v357 = vpack.c.b16 %v237, %v235
    %v358 = vpack.c.b16 %v238, %v236
    %v359 = vpack.c.b16 %v241, %v239
    %v360 = vpack.c.b16 %v242, %v240
    %v361 = vpack.c.b16 %v245, %v243
    %v362 = vpack.c.b16 %v246, %v244
    %v363 = vpack.c.b16 %v249, %v247
    %v364 = vpack.c.b16 %v250, %v248
    %v365 = vpack.c.b16 %v253, %v251
    %v366 = vpack.c.b16 %v254, %v252
    %v367 = vpack.c.b16 %v257, %v255
    %v368 = vpack.c.b16 %v258, %v256
    %v369 = vpack.c.b16 %v261, %v259
    %v370 = vpack.c.b16 %v262, %v260
    %v371 = vpack.c.b16 %v265, %v263
    %v372 = vpack.c.b16 %v266, %v264
    %v373 = vpack.c.b16 %v269, %v267
    %v374 = vpack.c.b16 %v270, %v268
    %v375 = vpack.c.b16 %v273, %v271
    %v376 = vpack.c.b16 %v274, %v272
    %v377 = vpack.c.b16 %v277, %v275
    %v378 = vpack.c.b16 %v278, %v276
    %v379 = vpack.c.b16 %v281, %v279
    %v380 = vpack.c.b16 %v282, %v280
    %v381 = vpack.c.b16 %v285, %v283
    %v382 = vpack.c.b16 %v286, %v284
    %v383 = vpack.c.b16 %v289, %v287
    %v384 = vpack.c.b16 %v290, %v288
    %v385 = vpack.c.b16 %v293, %v291
    %v386 = vpack.c.b16 %v294, %v292
    %v387 = vpack.c.b16 %v297, %v295
    %v388 = vpack.c.b16 %v298, %v296
    %v389 = vpack.c.b16 %v301, %v299
    %v390 = vpack.c.b16 %v302, %v300
    %v391 = vpack.c.b16 %v305, %v303
    %v392 = vpack.c.b16 %v306, %v304
    %v393 = vpack.c.b16 %v309, %v307
    %v394 = vpack.c.b16 %v310, %v308
    %v395 = vpack.c.b16 %v313, %v311
    %v396 = vpack.c.b16 %v314, %v312
    %v397 = vpack.c.b16 %v317, %v315
    %v398 = vpack.c.b16 %v318, %v316
    %v399 = vpack.c.b16 %v321, %v319
    %v400 = vpack.c.b16 %v322, %v320
    %v401 = vpack.c.b16 %v325, %v323
    %v402 = vpack.c.b16 %v326, %v324
    %v403 = vpack.c.b16 %v329, %v327
    %v404 = vpack.c.b16 %v330, %v328
    %v405 = vpack.c.b16 %v333, %v331
    %v406 = vpack.c.b16 %v334, %v332
    %v407 = vpack.c.b16 %v337, %v335
    %v408 = vpack.c.b16 %v338, %v336
    %v409 = vpack.c.b16 %v341, %v339
    %v410 = vpack.c.b16 %v342, %v340
    %v411 = vpack.c.b16 %v345, %v343
    %v412 = vpack.c.b16 %v346, %v344
    %v413 = vpack.c.b16 %v349, %v347
    %v414 = vpack.c.b16 %v350, %v348
    %479 = vmatprep.subr.bf16.mxu0 %v352
    %480 = vmatpush1.bf16.msra.mxu0 %v351
    %481 = vmatprep.subr.bf16.mxu0 %v354
    %482 = vmatpush1.bf16.msra.mxu0 %v353
    %483 = vmatprep.subr.bf16.mxu0 %v356
    %484 = vmatpush1.bf16.msra.mxu0 %v355
    %485 = vmatprep.subr.bf16.mxu0 %v358
    %486 = vmatpush1.bf16.msra.mxu0 %v357
    %487 = vmatprep.subr.bf16.mxu0 %v360
    %488 = vmatpush1.bf16.msra.mxu0 %v359
    %489 = vmatprep.subr.bf16.mxu0 %v362
    %490 = vmatpush1.bf16.msra.mxu0 %v361
    %491 = vmatprep.subr.bf16.mxu0 %v364
    %492 = vmatpush1.bf16.msra.mxu0 %v363
    %493 = vmatprep.subr.bf16.mxu0 %v366
    %494 = vmatpush1.bf16.msra.mxu0 %v365
    %495 = vmatprep.subr.bf16.mxu0 %v368
    %496 = vmatpush1.bf16.msra.mxu0 %v367
    %497 = vmatprep.subr.bf16.mxu0 %v370
    %498 = vmatpush1.bf16.msra.mxu0 %v369
    %499 = vmatprep.subr.bf16.mxu0 %v372
    %500 = vmatpush1.bf16.msra.mxu0 %v371
    %501 = vmatprep.subr.bf16.mxu0 %v374
    %502 = vmatpush1.bf16.msra.mxu0 %v373
    %503 = vmatprep.subr.bf16.mxu0 %v376
    %504 = vmatpush1.bf16.msra.mxu0 %v375
    %505 = vmatprep.subr.bf16.mxu0 %v378
    %506 = vmatpush1.bf16.msra.mxu0 %v377
    %507 = vmatprep.subr.bf16.mxu0 %v380
    %508 = vmatpush1.bf16.msra.mxu0 %v379
    %509 = vmatprep.subr.bf16.mxu0 %v382
    %510 = vmatpush1.bf16.msra.mxu0 %v381
    %511 = vmatprep.mubr.bf16.mxu0 %v92
    %512 = vmatmul.mubr.bf16.gmra.mrb[0].mxu0 %v91
    %v513 = vpop.f32.mrb[0].mxu0
    %v514 = vadd.f32 0.0, %v513
    %v515 = vpop.f32.mrb[0].mxu0
    %v516 = vadd.f32 0.0, %v515
    %v517 = vpop.f32.mrb[0].mxu0
    %v518 = vpop.f32.mrb[0].mxu0
    %519 = vdwg.mxu0
    %520 = vmatprep.subr.bf16.mxu0 %v384
    %521 = vmatpush1.bf16.msra.mxu0 %v383
    %522 = vmatprep.subr.bf16.mxu0 %v386
    %523 = vmatpush1.bf16.msra.mxu0 %v385
    %524 = vmatprep.subr.bf16.mxu0 %v388
    %525 = vmatpush1.bf16.msra.mxu0 %v387
    %526 = vmatprep.subr.bf16.mxu0 %v390
    %527 = vmatpush1.bf16.msra.mxu0 %v389
    %528 = vmatprep.subr.bf16.mxu0 %v392
    %529 = vmatpush1.bf16.msra.mxu0 %v391
    %530 = vmatprep.subr.bf16.mxu0 %v394
    %531 = vmatpush1.bf16.msra.mxu0 %v393
    %532 = vmatprep.subr.bf16.mxu0 %v396
    %533 = vmatpush1.bf16.msra.mxu0 %v395
    %534 = vmatprep.subr.bf16.mxu0 %v398
    %535 = vmatpush1.bf16.msra.mxu0 %v397
    %536 = vmatprep.subr.bf16.mxu0 %v400
    %537 = vmatpush1.bf16.msra.mxu0 %v399
    %538 = vmatprep.subr.bf16.mxu0 %v402
    %539 = vmatpush1.bf16.msra.mxu0 %v401
    %540 = vmatprep.subr.bf16.mxu0 %v404
    %541 = vmatpush1.bf16.msra.mxu0 %v403
    %542 = vmatprep.subr.bf16.mxu0 %v406
    %543 = vmatpush1.bf16.msra.mxu0 %v405
    %544 = vmatprep.subr.bf16.mxu0 %v408
    %545 = vmatpush1.bf16.msra.mxu0 %v407
    %546 = vmatprep.subr.bf16.mxu0 %v410
    %547 = vmatpush1.bf16.msra.mxu0 %v409
    %548 = vmatprep.subr.bf16.mxu0 %v412
    %549 = vmatpush1.bf16.msra.mxu0 %v411
    %550 = vmatprep.subr.bf16.mxu0 %v414
    %551 = vmatpush1.bf16.msra.mxu0 %v413
    %552 = vmatprep.mubr.bf16.mxu0 %v94
    %553 = vmatmul.mubr.bf16.gmra.mrb[0].mxu0 %v93
    %v554 = vpop.f32.mrb[0].mxu0
    %v555 = vadd.f32 %v514, %v554
    %v556 = vpop.f32.mrb[0].mxu0
    %v557 = vadd.f32 %v516, %v556
    %v558 = vpop.f32.mrb[0].mxu0
    %v559 = vpop.f32.mrb[0].mxu0
    %560 = vdwg.mxu0
    %v561 = vld [vmem:[%s2] sm:$0x3]
    %v562 = vld [vmem:[%s3] sm:$0x3]
    %v563 = vrot.slane %v555, 4
    %v564 = vadd.f32 %v555, %v563
    %v565 = vrot.slane %v564, 2
    %v566 = vadd.f32 %v564, %v565
    %v567 = vrot.slane %v566, 1
    %v568 = vadd.f32 %v566, %v567
    %v569 = vrot.slane %v557, 4
    %v570 = vadd.f32 %v557, %v569
    %v571 = vrot.slane %v570, 2
    %v572 = vadd.f32 %v570, %v571
    %v573 = vrot.slane %v572, 1
    %v574 = vadd.f32 %v572, %v573
    %v575 = vmul.f32 %v568, 0.125
    %v576 = vmul.f32 %v574, 0.125
    %v577 = vmul.f32 %v555, %v555
    %v578 = vmul.f32 %v557, %v557
    %v579 = vrot.slane %v577, 4
    %v580 = vadd.f32 %v577, %v579
    %v581 = vrot.slane %v580, 2
    %v582 = vadd.f32 %v580, %v581
    %v583 = vrot.slane %v582, 1
    %v584 = vadd.f32 %v582, %v583
    %v585 = vrot.slane %v578, 4
    %v586 = vadd.f32 %v578, %v585
    %v587 = vrot.slane %v586, 2
    %v588 = vadd.f32 %v586, %v587
    %v589 = vrot.slane %v588, 1
    %v590 = vadd.f32 %v588, %v589
    %v591 = vmul.f32 %v584, 0.125
    %v592 = vmul.f32 %v590, 0.125
    %v593 = vmul.f32 %v575, %v575
    %v594 = vmul.f32 %v576, %v576
    %v595 = vsub.f32 %v591, %v593
    %v596 = vsub.f32 %v592, %v594
    %v597 = vadd.f32 %v595, 1e-05
    %v598 = vadd.f32 %v596, 1e-05
    %v599 = vrsqrt.pop %v597
    %v600 = vrsqrt.pop %v598
    %v603 = vcombine.low %v599, %v600
    %v605 = vunpack.c.l.s4 1966171168
    %v606 = vunpack.c.0.s8 %v605
    %v607 = vlaneseq
    %v608 = vshrl.u32 %v607, 7
    %v609 = vsub.s32 %v606, %v608
    %v610 = vrot.slane %v603, %v609
    %v612 = vunpack.c.l.s4 1966171168
    %v613 = vunpack.c.0.s8 %v612
    %v614 = vlaneseq
    %v615 = vshrl.u32 %v614, 7
    %v616 = vsub.s32 %v613, %v615
    %v617 = vrot.slane %v610, %v616
    %v619 = vmul.f32 %v561, %v617
    %v621 = vlaneseq
    %v622 = vshrl.u32 %v621, 7
    %v623 = vsub.s32 0, %v622
    %v624 = vrot.slane %v619, %v623
    %v625 = vlaneseq
    %v626 = vshrl.u32 %v625, 7
    %v627 = vsub.s32 1, %v626
    %v628 = vrot.slane %v619, %v627
    %v631 = vmul.f32 %v575, %v624
    %v632 = vmul.f32 %v576, %v628
    %v635 = vcombine.low %v631, %v632
    %v637 = vunpack.c.l.s4 1966171168
    %v638 = vunpack.c.0.s8 %v637
    %v639 = vlaneseq
    %v640 = vshrl.u32 %v639, 7
    %v641 = vsub.s32 %v638, %v640
    %v642 = vrot.slane %v635, %v641
    %v644 = vunpack.c.l.s4 1966171168
    %v645 = vunpack.c.0.s8 %v644
    %v646 = vlaneseq
    %v647 = vshrl.u32 %v646, 7
    %v648 = vsub.s32 %v645, %v647
    %v649 = vrot.slane %v642, %v648
    %v651 = vsub.f32 %v562, %v649
    %v652 = vmul.f32 %v555, %v624
    %v653 = vmul.f32 %v557, %v628
    %v655 = vlaneseq
    %v656 = vshrl.u32 %v655, 7
    %v657 = vsub.s32 0, %v656
    %v658 = vrot.slane %v651, %v657
    %v659 = vlaneseq
    %v660 = vshrl.u32 %v659, 7
    %v661 = vsub.s32 1, %v660
    %v662 = vrot.slane %v651, %v661
    %v665 = vadd.f32 %v652, %v658
    %v666 = vadd.f32 %v653, %v662
    %vm667 = vcmp.ge.f32.partialorder %v665, 0.0
    %vm668 = vcmp.ge.f32.partialorder %v666, 0.0
    %v669 = vmul.f32 %v665, 0.01
    %v670 = vmul.f32 %v666, 0.01
    %v671 = vsel %vm667, %v665, %v669
    %v672 = vsel %vm668, %v666, %v670
    %v673 = vpack.c.bf16 %v671, %v671
    %v674 = vpack.c.bf16 %v672, %v672
    %v675 = vld [vmem:[#allocation7] sm:$0xf]
    %v676 = vld [vmem:[#allocation7 + $0x4] sm:$0xf]
    %v677 = vld [vmem:[#allocation7 + $0x8] sm:$0xf]
    %v678 = vld [vmem:[#allocation7 + $0xc] sm:$0xf]
    %v679 = vld [vmem:[#allocation7 + $0x10] sm:$0xf]
    %v680 = vld [vmem:[#allocation7 + $0x14] sm:$0xf]
    %v681 = vld [vmem:[#allocation7 + $0x18] sm:$0xf]
    %v682 = vld [vmem:[#allocation7 + $0x1c] sm:$0xf]
    %v683 = vld [vmem:[#allocation7 + $0x20] sm:$0xf]
    %v684 = vld [vmem:[#allocation7 + $0x24] sm:$0xf]
    %v685 = vld [vmem:[#allocation7 + $0x28] sm:$0xf]
    %v686 = vld [vmem:[#allocation7 + $0x2c] sm:$0xf]
    %v687 = vld [vmem:[#allocation7 + $0x30] sm:$0xf]
    %v688 = vld [vmem:[#allocation7 + $0x34] sm:$0xf]
    %v689 = vld [vmem:[#allocation7 + $0x38] sm:$0xf]
    %v690 = vld [vmem:[#allocation7 + $0x3c] sm:$0xf]
    %v691 = vld [vmem:[#allocation7 + $0x40] sm:$0xf]
    %v692 = vld [vmem:[#allocation7 + $0x44] sm:$0xf]
    %v693 = vld [vmem:[#allocation7 + $0x48] sm:$0xf]
    %v694 = vld [vmem:[#allocation7 + $0x4c] sm:$0xf]
    %v695 = vld [vmem:[#allocation7 + $0x50] sm:$0xf]
    %v696 = vld [vmem:[#allocation7 + $0x54] sm:$0xf]
    %v697 = vld [vmem:[#allocation7 + $0x58] sm:$0xf]
    %v698 = vld [vmem:[#allocation7 + $0x5c] sm:$0xf]
    %v699 = vld [vmem:[#allocation7 + $0x60] sm:$0xf]
    %v700 = vld [vmem:[#allocation7 + $0x64] sm:$0xf]
    %v701 = vld [vmem:[#allocation7 + $0x68] sm:$0xf]
    %v702 = vld [vmem:[#allocation7 + $0x6c] sm:$0xf]
    %v703 = vld [vmem:[#allocation7 + $0x70] sm:$0xf]
    %v704 = vld [vmem:[#allocation7 + $0x74] sm:$0xf]
    %v705 = vld [vmem:[#allocation7 + $0x78] sm:$0xf]
    %v706 = vld [vmem:[#allocation7 + $0x7c] sm:$0xf]
    %v739 = vunpack.c.l.b16 %v675
    %v740 = vunpack.c.l.b16 %v676
    %v741 = vunpack.c.l.b16 %v677
    %v742 = vunpack.c.l.b16 %v678
    %v743 = vunpack.c.l.b16 %v679
    %v744 = vunpack.c.l.b16 %v680
    %v745 = vunpack.c.l.b16 %v681
    %v746 = vunpack.c.l.b16 %v682
    %v747 = vunpack.c.l.b16 %v683
    %v748 = vunpack.c.l.b16 %v684
    %v749 = vunpack.c.l.b16 %v685
    %v750 = vunpack.c.l.b16 %v686
    %v751 = vunpack.c.l.b16 %v687
    %v752 = vunpack.c.l.b16 %v688
    %v753 = vunpack.c.l.b16 %v689
    %v754 = vunpack.c.l.b16 %v690
    %v755 = vunpack.c.l.b16 %v691
    %v756 = vunpack.c.l.b16 %v692
    %v757 = vunpack.c.l.b16 %v693
    %v758 = vunpack.c.l.b16 %v694
    %v759 = vunpack.c.l.b16 %v695
    %v760 = vunpack.c.l.b16 %v696
    %v761 = vunpack.c.l.b16 %v697
    %v762 = vunpack.c.l.b16 %v698
    %v763 = vunpack.c.l.b16 %v699
    %v764 = vunpack.c.l.b16 %v700
    %v765 = vunpack.c.l.b16 %v701
    %v766 = vunpack.c.l.b16 %v702
    %v767 = vunpack.c.l.b16 %v703
    %v768 = vunpack.c.l.b16 %v704
    %v769 = vunpack.c.l.b16 %v705
    %v770 = vunpack.c.l.b16 %v706
    %v771 = vpack.c.b16 %v740, %v739
    %v772 = vpack.c.b16 %v742, %v741
    %v773 = vpack.c.b16 %v744, %v743
    %v774 = vpack.c.b16 %v746, %v745
    %v775 = vpack.c.b16 %v748, %v747
    %v776 = vpack.c.b16 %v750, %v749
    %v777 = vpack.c.b16 %v752, %v751
    %v778 = vpack.c.b16 %v754, %v753
    %v779 = vpack.c.b16 %v756, %v755
    %v780 = vpack.c.b16 %v758, %v757
    %v781 = vpack.c.b16 %v760, %v759
    %v782 = vpack.c.b16 %v762, %v761
    %v783 = vpack.c.b16 %v764, %v763
    %v784 = vpack.c.b16 %v766, %v765
    %v785 = vpack.c.b16 %v768, %v767
    %v786 = vpack.c.b16 %v770, %v769
    %803 = vmatprep.subr.bf16.mxu0 0
    %804 = vmatpush1.bf16.msra.mxu0 %v771
    %805 = vmatprep.subr.bf16.mxu0 0
    %806 = vmatpush1.bf16.msra.mxu0 %v772
    %807 = vmatprep.subr.bf16.mxu0 0
    %808 = vmatpush1.bf16.msra.mxu0 %v773
    %809 = vmatprep.subr.bf16.mxu0 0
    %810 = vmatpush1.bf16.msra.mxu0 %v774
    %811 = vmatprep.subr.bf16.mxu0 0
    %812 = vmatpush1.bf16.msra.mxu0 %v775
    %813 = vmatprep.subr.bf16.mxu0 0
    %814 = vmatpush1.bf16.msra.mxu0 %v776
    %815 = vmatprep.subr.bf16.mxu0 0
    %816 = vmatpush1.bf16.msra.mxu0 %v777
    %817 = vmatprep.subr.bf16.mxu0 0
    %818 = vmatpush1.bf16.msra.mxu0 %v778
    %819 = vmatprep.subr.bf16.mxu0 0
    %820 = vmatpush1.bf16.msra.mxu0 %v779
    %821 = vmatprep.subr.bf16.mxu0 0
    %822 = vmatpush1.bf16.msra.mxu0 %v780
    %823 = vmatprep.subr.bf16.mxu0 0
    %824 = vmatpush1.bf16.msra.mxu0 %v781
    %825 = vmatprep.subr.bf16.mxu0 0
    %826 = vmatpush1.bf16.msra.mxu0 %v782
    %827 = vmatprep.subr.bf16.mxu0 0
    %828 = vmatpush1.bf16.msra.mxu0 %v783
    %829 = vmatprep.subr.bf16.mxu0 0
    %830 = vmatpush1.bf16.msra.mxu0 %v784
    %831 = vmatprep.subr.bf16.mxu0 0
    %832 = vmatpush1.bf16.msra.mxu0 %v785
    %833 = vmatprep.subr.bf16.mxu0 0
    %834 = vmatpush1.bf16.msra.mxu0 %v786
    %835 = vmatprep.mubr.bf16.mxu0 %v674
    %836 = vmatmul.mubr.bf16.gmra.mrb[0].mxu0 %v673
    %v837 = vpop.f32.mrb[0].mxu0
    %v838 = vadd.f32 0.0, %v837
    %v839 = vpop.f32.mrb[0].mxu0
    %v840 = vpop.f32.mrb[0].mxu0
    %v841 = vpop.f32.mrb[0].mxu0
    %842 = vdwg.mxu0
    %v843 = vld [vmem:[%s5] sm:$0x1]
    %v844 = vld [vmem:[%s6] sm:$0x1]
    %v845 = vrot.slane %v838, 4
    %v846 = vadd.f32 %v838, %v845
    %v847 = vrot.slane %v846, 2
    %v848 = vadd.f32 %v846, %v847
    %v849 = vrot.slane %v848, 1
    %v850 = vadd.f32 %v848, %v849
    %v851 = vmul.f32 %v850, 0.125
    %v852 = vmul.f32 %v838, %v838
    %v853 = vrot.slane %v852, 4
    %v854 = vadd.f32 %v852, %v853
    %v855 = vrot.slane %v854, 2
    %v856 = vadd.f32 %v854, %v855
    %v857 = vrot.slane %v856, 1
    %v858 = vadd.f32 %v856, %v857
    %v859 = vmul.f32 %v858, 0.125
    %v860 = vmul.f32 %v851, %v851
    %v861 = vsub.f32 %v859, %v860
    %v862 = vadd.f32 %v861, 1e-05
    %v863 = vrsqrt.pop %v862
    %v864 = vmul.f32 %v843, %v863
    %v865 = vmul.f32 %v851, %v864
    %v866 = vsub.f32 %v844, %v865
    %v868 = vlaneseq
    %v869 = vshrl.u32 %v868, 7
    %v870 = vsub.s32 0, %v869
    %v871 = vrot.slane %v864, %v870
    %v873 = vmul.f32 %v838, %v871
    %v875 = vlaneseq
    %v876 = vshrl.u32 %v875, 7
    %v877 = vsub.s32 0, %v876
    %v878 = vrot.slane %v866, %v877
    %v880 = vadd.f32 %v873, %v878
    %vm881 = vcmp.ge.f32.partialorder %v880, 0.0
    %v882 = vmul.f32 %v880, 0.01
    %v883 = vsel %vm881, %v880, %v882
    %v884 = vpack.c.bf16 %v883, %v883
    %v885 = vld [vmem:[#allocation8] sm:$0xf]
    %v886 = vld [vmem:[#allocation8 + $0x4] sm:$0xf]
    %v887 = vld [vmem:[#allocation8 + $0x8] sm:$0xf]
    %v888 = vld [vmem:[#allocation8 + $0xc] sm:$0xf]
    %v889 = vld [vmem:[#allocation8 + $0x10] sm:$0xf]
    %v890 = vld [vmem:[#allocation8 + $0x14] sm:$0xf]
    %v891 = vld [vmem:[#allocation8 + $0x18] sm:$0xf]
    %v892 = vld [vmem:[#allocation8 + $0x1c] sm:$0xf]
    %v893 = vld [vmem:[#allocation8 + $0x20] sm:$0xf]
    %v894 = vld [vmem:[#allocation8 + $0x24] sm:$0xf]
    %v895 = vld [vmem:[#allocation8 + $0x28] sm:$0xf]
    %v896 = vld [vmem:[#allocation8 + $0x2c] sm:$0xf]
    %v897 = vld [vmem:[#allocation8 + $0x30] sm:$0xf]
    %v898 = vld [vmem:[#allocation8 + $0x34] sm:$0xf]
    %v899 = vld [vmem:[#allocation8 + $0x38] sm:$0xf]
    %v900 = vld [vmem:[#allocation8 + $0x3c] sm:$0xf]
    %v901 = vld [vmem:[%s8] sm:$0x1]
    %v903 = vlaneseq
    %v904 = vshrl.u32 %v903, 7
    %v905 = vsub.s32 0, %v904
    %v906 = vrot.slane %v901, %v905
    %v924 = vunpack.c.l.b16 %v885
    %v925 = vunpack.c.l.b16 %v886
    %v926 = vunpack.c.l.b16 %v887
    %v927 = vunpack.c.l.b16 %v888
    %v928 = vunpack.c.l.b16 %v889
    %v929 = vunpack.c.l.b16 %v890
    %v930 = vunpack.c.l.b16 %v891
    %v931 = vunpack.c.l.b16 %v892
    %v932 = vunpack.c.l.b16 %v893
    %v933 = vunpack.c.l.b16 %v894
    %v934 = vunpack.c.l.b16 %v895
    %v935 = vunpack.c.l.b16 %v896
    %v936 = vunpack.c.l.b16 %v897
    %v937 = vunpack.c.l.b16 %v898
    %v938 = vunpack.c.l.b16 %v899
    %v939 = vunpack.c.l.b16 %v900
    %v940 = vpack.c.b16 %v925, %v924
    %v941 = vpack.c.b16 %v927, %v926
    %v942 = vpack.c.b16 %v929, %v928
    %v943 = vpack.c.b16 %v931, %v930
    %v944 = vpack.c.b16 %v933, %v932
    %v945 = vpack.c.b16 %v935, %v934
    %v946 = vpack.c.b16 %v937, %v936
    %v947 = vpack.c.b16 %v939, %v938
    %956 = vmatprep.subr.bf16.mxu0 0
    %957 = vmatpush1.bf16.msra.mxu0 %v940
    %958 = vmatprep.subr.bf16.mxu0 0
    %959 = vmatpush1.bf16.msra.mxu0 %v941
    %960 = vmatprep.subr.bf16.mxu0 0
    %961 = vmatpush1.bf16.msra.mxu0 %v942
    %962 = vmatprep.subr.bf16.mxu0 0
    %963 = vmatpush1.bf16.msra.mxu0 %v943
    %964 = vmatprep.subr.bf16.mxu0 0
    %965 = vmatpush1.bf16.msra.mxu0 %v944
    %966 = vmatprep.subr.bf16.mxu0 0
    %967 = vmatpush1.bf16.msra.mxu0 %v945
    %968 = vmatprep.subr.bf16.mxu0 0
    %969 = vmatpush1.bf16.msra.mxu0 %v946
    %970 = vmatprep.subr.bf16.mxu0 0
    %971 = vmatpush1.bf16.msra.mxu0 %v947
    %972 = vmatprep.subr.bf16.mxu0 0
    %973 = vmatpush1.bf16.msra.mxu0 0
    %974 = vmatprep.subr.bf16.mxu0 0
    %975 = vmatpush1.bf16.msra.mxu0 0
    %976 = vmatprep.subr.bf16.mxu0 0
    %977 = vmatpush1.bf16.msra.mxu0 0
    %978 = vmatprep.subr.bf16.mxu0 0
    %979 = vmatpush1.bf16.msra.mxu0 0
    %980 = vmatprep.subr.bf16.mxu0 0
    %981 = vmatpush1.bf16.msra.mxu0 0
    %982 = vmatprep.subr.bf16.mxu0 0
    %983 = vmatpush1.bf16.msra.mxu0 0
    %984 = vmatprep.subr.bf16.mxu0 0
    %985 = vmatpush1.bf16.msra.mxu0 0
    %986 = vmatprep.subr.bf16.mxu0 0
    %987 = vmatpush1.bf16.msra.mxu0 0
    %988 = vmatprep.mubr.bf16.mxu0 0
    %989 = vmatmul.mubr.bf16.gmra.mrb[0].mxu0 %v884
    %v990 = vpop.f32.mrb[0].mxu0
    %v991 = vadd.f32 %v906, %v990
    %v992 = vpop.f32.mrb[0].mxu0
    %v993 = vpop.f32.mrb[0].mxu0
    %v994 = vpop.f32.mrb[0].mxu0
    %995 = vdwg.mxu0
    %997 = vrot.lane.b32.xlu0 %v991, 1
    %v998 = vpop.permute.xlu0 %997
    %v1000 = vsub.f32 %v991, %v998
    %v1001 = vmax.f32 %v1000, 0.0
    %v1002 = vand.u32 2147483647, %v1000
    %v1003 = vsub.f32 0.0, %v1002
    %v1004 = vmul.f32 %v1003, 1.442695
    %v1005 = vpow.pop %v1004
    %v1006 = vadd.f32 %v1005, 1.0
    %v1007 = vlog2.pop %v1006
    %v1008 = vmul.f32 %v1007, 0.6931472
    %v1009 = vmul.f32 -0.5, %v1005
    %v1010 = vadd.f32 %v1009, 1.0
    %v1011 = vmul.f32 %v1010, %v1005
    %v1012 = vand.u32 2147483647, %v1005
    %vm1013 = vcmp.lt.f32.partialorder %v1012, 0.0004427343
    %v1014 = vsel %vm1013, %v1011, %v1008
    %v1015 = vadd.f32 %v1001, %v1014
    %v1016 = vsub.f32 0.0, %v1015
    %v1017 = vsub.f32 %v1000, %v1015
    %v1018 = vlaneseq
    %v1019 = vand.u32 %v1018, 127
    %vm1020 = vcmp.eq.s32.totalorder %v1019, 0
    %vm1021 = vcmp.eq.s32.totalorder %v1019, 1
    %1023 = vset.pattern.permute.xlu0 1
    %1024 = vperm.xlu0 %1023, %v1017
    %v1025 = vpop.permute.xlu0 %1024
    %v1027 = vsel %vm1021, %v1025, 0.0
    %1029 = vset.pattern.permute.xlu0 1
    %1030 = vperm.xlu0 %1029, %v1016
    %v1031 = vpop.permute.xlu0 %1030
    %v1033 = vsel %vm1020, %v1031, %v1027
    %1034 = vst [vmem:[#allocation10] sm:$0xff] %v1033
    // Predicated region
    $region54: #{tpu_custom_call.1} parent=1 // pred_check
      _
    $region55: #{tpu_custom_call.1} parent=1 // pred_check_branch
      %1036 = sbr.rel (0) target = $region57
    $region56: #{tpu_custom_call.1} parent=1 // pred_region
      %s1038 = ssub.s32 128, 128
      %1039 = vsyncadd [#allocation4], %s1038
      %s1041 = sshll.u32 [#allocation10], 4
      %s1042 = int_to_ptr.vmem [resolvable:$true] %s1041
      %1044 = dma.vmem_to_hbm [thread:$0]  %s1042, 128, %s9, [#allocation4]
    $region57: #{tpu_custom_call.1} parent=1 // pred_fallthru
      _
    // Predicated region
    $region58: #{tpu_custom_call.1} parent=1 // pred_check
      _
    $region59: #{tpu_custom_call.1} parent=1 // pred_check_branch
      %1046 = sbr.rel (0) target = $region61
    $region60: #{tpu_custom_call.1} parent=1 // pred_region
      %1047 = dma.done [#allocation4], 128
    $region61: #{tpu_custom_call.1} parent=1 // pred_fallthru
      _
    %1048 = vsyncpa [#allocation3], 1
    %1049 = vsyncpa [#allocation6], 1
    %1050 = vsyncpa [#allocation9], 1
    %1051 = vsyncpa [#allocation4], 1

</llo_original>
